<compile_context>
chip_gen: v6e
topology: v6e:2x2x1
jax: 0.10.0
libtpu: 0.0.40
codegen_flags: <defaults>
</compile_context>

<pallas_src>
import functools

import jax
import jax.numpy as jnp
from jax.experimental import pallas as pl
from jax.experimental.pallas import tpu as pltpu


def _shortconv_kernel(*refs, d_conv, has_mask, approx_silu):
    W = d_conv
    if has_mask:
        x_ref, m_ref, wb_ref, o_ref, carry_ref = refs
    else:
        x_ref, wb_ref, o_ref, carry_ref = refs
        m_ref = None

    li = pl.program_id(2)                               # L-tile index (innermost, arbitrary)

    x = x_ref[...]                                      # (TL, td), native dtype
    if has_mask:
        # masked_fill(~mask, 0) fused into the kernel.
        x = jnp.where(m_ref[...] != 0, x, jnp.zeros((), x.dtype))

    xf = x.astype(jnp.float32)                          # single explicit upcast
    TL = xf.shape[0]
    CPAD = carry_ref.shape[0]                           # >= W-1, multiple of 8

    # Causal halo carried across L tiles: zero it at the start of each sequence.
    @pl.when(li == 0)
    def _():
        carry_ref[...] = jnp.zeros_like(carry_ref)

    wb = wb_ref[...].astype(jnp.float32)                # (W+1, td): taps 0..W-1, row W = bias

    # Newest tap + bias.
    acc = xf * wb[W - 1] + wb[W]

    if W > 1:
        hist = carry_ref[...]                           # (CPAD, td) f32, history in last W-1 rows
        # Save this tile's (masked) tail as the left context for the next L tile.
        if TL >= W - 1:
            carry_ref[CPAD - (W - 1):, :] = xf[TL - (W - 1):, :]
        # Extended sequence with W-1 rows of left context; no causal select masks
        # are needed because the halo is zero at li == 0.
        xp = jnp.concatenate([hist, xf], axis=0)        # (CPAD + TL, td)
        for w_i in range(W - 1):
            off = CPAD - (W - 1) + w_i
            acc = acc + xp[off:off + TL, :] * wb[w_i]

    # SiLU. Approx path keeps everything on the single EUP slot (exp + vrcp).
    if approx_silu:
        e = jnp.exp(jnp.minimum(-acc, 60.0))            # clamp avoids inf -> NaN
        y = acc * pl.reciprocal(1.0 + e, approx=True)
    else:
        y = acc * jax.nn.sigmoid(acc)
    o_ref[...] = y.astype(o_ref.dtype)


def _vmem_cap_bytes():
    """~75% of physical per-core VMEM (leaves headroom for compiler scratch)."""
    try:
        cap = int(pltpu.get_tpu_info().vmem_capacity_bytes)
    except Exception:
        cap = 64 << 20                                   # assume v7x-sized VMEM
    return (cap * 3) // 4


def _choose_tiles(B, L, D, itemsize, W, footprint_target=32 << 20):
    """Pick (td, tl): channel tile (multiple of 128 dividing D) and L tile.

    Sizes on the *total* per-step footprint: 2x double-buffered input tile +
    2x output tile + ~4 f32-sized in-kernel intermediates.
    """

    def footprint(tl, td):
        return 4 * tl * td * itemsize + 4 * tl * td * 4

    # Channel-tile candidates: divisors of D that are multiples of 128.
    td_cands = [c for c in range(128, D + 1, 128) if D % c == 0]
    td_cands.sort(reverse=True)
    if not td_cands:
        td_cands = [D]                                   # small / irregular D

    td, tl = None, None
    # 1) largest channel tile whose full-L block fits the footprint target.
    for cand in td_cands:
        if footprint(L, cand) <= footprint_target:
            td, tl = cand, L
            break

    # 2) even the smallest channel tile is too big -> tile L with a causal halo.
    if td is None:
        td = td_cands[-1]
        tl_cands = [t for t in range(32, L, 32) if L % t == 0]   # 32-aligned (safe for int8 mask)
        if not tl_cands:
            tl_cands = [t for t in range(8, L, 8) if L % t == 0]
        tl_cands.sort(reverse=True)
        for t in tl_cands:
            if t >= W - 1 and footprint(t, td) <= footprint_target:
                tl = t
                break
        if tl is None:
            tl = L                                       # TODO(synk): ragged L fallback

    # 3) Megacore (v7x): ensure >= 2 parallel grid points when feasible.
    if B * (D // td) < 2:
        smaller = [c for c in td_cands if c < td]
        if smaller:
            td = smaller[0]

    return td, tl


def short_conv_forward(x, weight, bias, mask=None, *, d_tile=None, l_tile=None,
                       approx_silu=True):
    """Causal depthwise ShortConv forward.

    Args:
      x:      (B, L, D) input.
      weight: (D, W) depthwise conv weights (PyTorch conv1d.weight squeezed).
      bias:   (D,)   conv bias.
      mask:   optional (B, L) bool mask; False positions are zeroed (fused).
      d_tile, l_tile: optional tile overrides (must divide D / L).
      approx_silu: use EUP approx-reciprocal sigmoid (fast); False = exact.

    Returns:
      (B, L, D) output, same dtype as x.
    """
    B, L, D = x.shape
    W = weight.shape[1]

    # Fold bias into the weight tensor as row W -> one less BlockSpec/DMA.
    wb = jnp.concatenate(
        [jnp.transpose(weight, (1, 0)), bias.reshape(1, D).astype(weight.dtype)],
        axis=0)                                          # (W+1, D), channels on lanes

    itemsize = jnp.dtype(x.dtype).itemsize
    td, tl = _choose_tiles(B, L, D, itemsize, W)
    if d_tile is not None:
        td = d_tile
    if l_tile is not None:
        tl = l_tile
    assert D % td == 0, "channel tile must divide D"
    assert td == D or td % 128 == 0, "channel tile must be a multiple of 128"
    assert L % tl == 0, "L tile must divide L"
    assert tl == L or tl % 8 == 0, "L tile must be a multiple of 8"
    n_d, n_l = D // td, L // tl
    if n_l > 1:
        assert tl >= W - 1, "L tile must cover the causal halo"

    has_mask = mask is not None
    kernel = functools.partial(_shortconv_kernel, d_conv=W, has_mask=has_mask,
                               approx_silu=approx_silu)

    in_specs = [pl.BlockSpec((pl.Squeezed(), tl, td), lambda b, dj, li: (b, li, dj))]
    inputs = [x]
    if has_mask:
        m3 = mask.astype(jnp.int8).reshape(B, L, 1)      # narrow dtype: 4x fewer mask bytes
        in_specs.append(pl.BlockSpec((pl.Squeezed(), tl, 1), lambda b, dj, li: (b, li, 0)))
        inputs.append(m3)
    in_specs.append(pl.BlockSpec((W + 1, td), lambda b, dj, li: (0, dj)))   # taps+bias
    inputs.append(wb)

    out_spec = pl.BlockSpec((pl.Squeezed(), tl, td), lambda b, dj, li: (b, li, dj))

    # Causal-halo carry: last W-1 rows of the previous L tile (f32), padded to
    # a multiple of 8 sublanes so the concat boundary stays tile-aligned.
    cpad = max(8, ((W - 1 + 7) // 8) * 8)

    # Scoped-VMEM request: total per-step footprint estimate (double-buffered
    # in/out tiles + f32 intermediates), with slack, capped below physical.
    bb = tl * td * itemsize
    bb32 = tl * td * 4
    est = 4 * bb + 4 * bb32 + (2 << 20)
    vmem_limit = int(min(_vmem_cap_bytes(), max(32 << 20, int(est * 1.25))))

    out = pl.pallas_call(
        kernel,
        out_shape=jax.ShapeDtypeStruct((B, L, D), x.dtype),
        grid_spec=pltpu.PrefetchScalarGridSpec(
            num_scalar_prefetch=0,
            grid=(B, n_d, n_l),                          # L innermost: halo carry is sequential
            in_specs=in_specs,
            out_specs=out_spec,
            scratch_shapes=[pltpu.VMEM((cpad, td), jnp.float32)],
        ),
        compiler_params=pltpu.CompilerParams(
            dimension_semantics=("parallel", "parallel", "arbitrary"),
            vmem_limit_bytes=vmem_limit,
        ),
    )(*inputs)
    return out


def _reference(x, weight, bias, mask=None):
    # Pure-JAX reference for the causal depthwise conv + silu.
    if mask is not None:
        x = jnp.where(mask[..., None], x, jnp.zeros((), x.dtype))
    B, L, D = x.shape
    W = weight.shape[1]
    xf = x.astype(jnp.float32)
    acc = jnp.zeros((B, L, D), jnp.float32)
    for w in range(W):
        shift = W - 1 - w
        xs = jnp.pad(xf, ((0, 0), (shift, 0), (0, 0)))[:, :L, :]
        acc = acc + xs * weight[:, w].astype(jnp.float32)[None, None, :]
    acc = acc + bias.astype(jnp.float32)[None, None, :]
    return (acc * jax.nn.sigmoid(acc)).astype(x.dtype)


if __name__ == "__main__":
    # Module config: dim=D, d_conv=4, causal=True, act='silu'
    B, L, D, W = 2, 8, 32, 4

    key = jax.random.PRNGKey(0)
    kx, kw, kb, km, kx2, kw2, kb2, km2 = jax.random.split(key, 8)

    x = jax.random.normal(kx, (B, L, D), dtype=jnp.float32)

    # nn.Conv1d(dim, dim, kernel_size=W, groups=dim): weight (D, 1, W) -> (D, W).
    fan_in = 1 * W
    bound = 1.0 / (fan_in ** 0.5)
    conv_weight = jax.random.uniform(kw, (D, W), jnp.float32, -bound, bound)
    conv_bias = jax.random.uniform(kb, (D,), jnp.float32, -bound, bound)

    # 1) no mask, single tile, exact SiLU -> tight tolerance validates the conv.
    y = jax.block_until_ready(
        short_conv_forward(x, conv_weight, conv_bias, approx_silu=False))
    y_ref = _reference(x, conv_weight, conv_bias)
    assert y.shape == (B, L, D)
    assert jnp.allclose(y, y_ref, atol=1e-5, rtol=1e-5), "mismatch (no mask)"

    # 2) fused-mask path with the default approx-SiLU (EUP vrcp) -> loose tol.
    mask = jax.random.bernoulli(km, 0.7, (B, L))
    y_m = jax.block_until_ready(
        short_conv_forward(x, conv_weight, conv_bias, mask=mask))
    y_m_ref = _reference(x, conv_weight, conv_bias, mask=mask)
    assert jnp.allclose(y_m, y_m_ref, atol=2e-2, rtol=2e-2), "mismatch (masked, approx)"

    # 3) D-tiled + L-tiled grid (exercises the causal-halo carry) + mask,
    #    exact SiLU -> tight tolerance validates the halo logic.
    B2, L2, D2 = 2, 64, 256
    x2 = jax.random.normal(kx2, (B2, L2, D2), dtype=jnp.float32)
    w2 = jax.random.uniform(kw2, (D2, W), jnp.float32, -bound, bound)
    b2 = jax.random.uniform(kb2, (D2,), jnp.float32, -bound, bound)
    mask2 = jax.random.bernoulli(km2, 0.8, (B2, L2))
    y2 = jax.block_until_ready(
        short_conv_forward(x2, w2, b2, mask=mask2, d_tile=128, l_tile=32,
                           approx_silu=False))
    y2_ref = _reference(x2, w2, b2, mask=mask2)
    assert jnp.allclose(y2, y2_ref, atol=1e-5, rtol=1e-5), "mismatch (D+L tiled, halo)"

    print("KERNEL_OK")
</pallas_src>

<mosaic_0001>
module attributes {stable_mosaic.version = 11 : i64} {
  func.func @_shortconv_kernel(%arg0: i32, %arg1: i32, %arg2: i32, %arg3: memref<1x8x32xf32, #tpu.memory_space<vmem>>, %arg4: memref<5x32xf32, #tpu.memory_space<vmem>>, %arg5: memref<1x8x32xf32, #tpu.memory_space<vmem>>, %arg6: memref<8x32xf32, #tpu.memory_space<vmem>>) attributes {dimension_semantics = [#tpu.dimension_semantics<parallel>, #tpu.dimension_semantics<parallel>, #tpu.dimension_semantics<arbitrary>], iteration_bounds = array<i64: 2, 1, 1>, scalar_prefetch = 0 : i64, scratch_operands = 1 : i64, tpu.core_type = #tpu.core_type<tc>, window_params = [{transform_indices = @transform_0, window_bounds = array<i64: 1, 8, 32>}, {transform_indices = @transform_1, window_bounds = array<i64: 5, 32>}, {transform_indices = @transform_2, window_bounds = array<i64: 1, 8, 32>}]} {
    %c0 = arith.constant 0 : index
    %c0_0 = arith.constant 0 : index
    %c0_1 = arith.constant 0 : index
    %0 = vector.load %arg3[%c0, %c0_0, %c0_1] : memref<1x8x32xf32, #tpu.memory_space<vmem>>, vector<1x8x32xf32>
    %1 = vector.shape_cast %0 : vector<1x8x32xf32> to vector<8x32xf32>
    %c0_i32 = arith.constant 0 : i32
    %2 = arith.cmpi eq, %arg2, %c0_i32 : i32
    %3 = arith.extui %2 : i1 to i32
    %c0_i32_2 = arith.constant 0 : i32
    %4 = arith.cmpi ne, %3, %c0_i32_2 : i32
    scf.if %4 {
      %cst_11 = arith.constant 0.000000e+00 : f32
      %50 = vector.broadcast %cst_11 : f32 to vector<8x32xf32>
      %c0_12 = arith.constant 0 : index
      %c0_13 = arith.constant 0 : index
      %51 = vector.load %arg6[%c0_12, %c0_13] : memref<8x32xf32, #tpu.memory_space<vmem>>, vector<8x32xf32>
      tpu.vector_store %arg6[%c0_12, %c0_13], %50 {strides = array<i32>} : memref<8x32xf32, #tpu.memory_space<vmem>>, vector<8x32xf32>,
    } else {
    }
    %c0_3 = arith.constant 0 : index
    %c0_4 = arith.constant 0 : index
    %5 = vector.load %arg4[%c0_3, %c0_4] : memref<5x32xf32, #tpu.memory_space<vmem>>, vector<5x32xf32>
    %6 = vector.extract_strided_slice %5 {offsets = [3, 0], sizes = [1, 32], strides = [1, 1]} : vector<5x32xf32> to vector<1x32xf32>
    %7 = vector.shape_cast %6 : vector<1x32xf32> to vector<32xf32>
    %8 = vector.shape_cast %7 : vector<32xf32> to vector<1x32xf32>
    %9 = vector.broadcast %8 : vector<1x32xf32> to vector<8x32xf32>
    %10 = arith.mulf %1, %9 : vector<8x32xf32>
    %11 = vector.extract_strided_slice %5 {offsets = [4, 0], sizes = [1, 32], strides = [1, 1]} : vector<5x32xf32> to vector<1x32xf32>
    %12 = vector.shape_cast %11 : vector<1x32xf32> to vector<32xf32>
    %13 = vector.shape_cast %12 : vector<32xf32> to vector<1x32xf32>
    %14 = vector.broadcast %13 : vector<1x32xf32> to vector<8x32xf32>
    %15 = arith.addf %10, %14 : vector<8x32xf32>
    %c0_5 = arith.constant 0 : index
    %c0_6 = arith.constant 0 : index
    %16 = vector.load %arg6[%c0_5, %c0_6] : memref<8x32xf32, #tpu.memory_space<vmem>>, vector<8x32xf32>
    %17 = vector.extract_strided_slice %1 {offsets = [5, 0], sizes = [3, 32], strides = [1, 1]} : vector<8x32xf32> to vector<3x32xf32>
    %c5 = arith.constant 5 : index
    %c0_7 = arith.constant 0 : index
    %18 = vector.load %arg6[%c5, %c0_7] : memref<8x32xf32, #tpu.memory_space<vmem>>, vector<3x32xf32>
    tpu.vector_store %arg6[%c5, %c0_7], %17 {strides = array<i32>} : memref<8x32xf32, #tpu.memory_space<vmem>>, vector<3x32xf32>,
    %19 = tpu.concatenate %16, %1 in 0 : vector<8x32xf32>, vector<8x32xf32> -> vector<16x32xf32>
    %20 = vector.extract_strided_slice %19 {offsets = [5, 0], sizes = [8, 32], strides = [1, 1]} : vector<16x32xf32> to vector<8x32xf32>
    %21 = vector.extract_strided_slice %5 {offsets = [0, 0], sizes = [1, 32], strides = [1, 1]} : vector<5x32xf32> to vector<1x32xf32>
    %22 = vector.shape_cast %21 : vector<1x32xf32> to vector<32xf32>
    %23 = vector.shape_cast %22 : vector<32xf32> to vector<1x32xf32>
    %24 = vector.broadcast %23 : vector<1x32xf32> to vector<8x32xf32>
    %25 = arith.mulf %20, %24 : vector<8x32xf32>
    %26 = arith.addf %15, %25 : vector<8x32xf32>
    %27 = vector.extract_strided_slice %19 {offsets = [6, 0], sizes = [8, 32], strides = [1, 1]} : vector<16x32xf32> to vector<8x32xf32>
    %28 = vector.extract_strided_slice %5 {offsets = [1, 0], sizes = [1, 32], strides = [1, 1]} : vector<5x32xf32> to vector<1x32xf32>
    %29 = vector.shape_cast %28 : vector<1x32xf32> to vector<32xf32>
    %30 = vector.shape_cast %29 : vector<32xf32> to vector<1x32xf32>
    %31 = vector.broadcast %30 : vector<1x32xf32> to vector<8x32xf32>
    %32 = arith.mulf %27, %31 : vector<8x32xf32>
    %33 = arith.addf %26, %32 : vector<8x32xf32>
    %34 = vector.extract_strided_slice %19 {offsets = [7, 0], sizes = [8, 32], strides = [1, 1]} : vector<16x32xf32> to vector<8x32xf32>
    %35 = vector.extract_strided_slice %5 {offsets = [2, 0], sizes = [1, 32], strides = [1, 1]} : vector<5x32xf32> to vector<1x32xf32>
    %36 = vector.shape_cast %35 : vector<1x32xf32> to vector<32xf32>
    %37 = vector.shape_cast %36 : vector<32xf32> to vector<1x32xf32>
    %38 = vector.broadcast %37 : vector<1x32xf32> to vector<8x32xf32>
    %39 = arith.mulf %34, %38 : vector<8x32xf32>
    %40 = arith.addf %33, %39 : vector<8x32xf32>
    %41 = arith.negf %40 : vector<8x32xf32>
    %42 = math.exp %41 : vector<8x32xf32>
    %cst = arith.constant 1.000000e+00 : f32
    %43 = vector.broadcast %cst : f32 to vector<8x32xf32>
    %44 = arith.addf %43, %42 : vector<8x32xf32>
    %45 = arith.divf %43, %44 : vector<8x32xf32>
    %46 = arith.mulf %40, %45 : vector<8x32xf32>
    %c0_8 = arith.constant 0 : index
    %c0_9 = arith.constant 0 : index
    %c0_10 = arith.constant 0 : index
    %47 = vector.load %arg5[%c0_8, %c0_9, %c0_10] : memref<1x8x32xf32, #tpu.memory_space<vmem>>, vector<1x8x32xf32>
    %48 = vector.shape_cast %47 : vector<1x8x32xf32> to vector<8x32xf32>
    %49 = vector.shape_cast %46 : vector<8x32xf32> to vector<1x8x32xf32>
    tpu.vector_store %arg5[%c0_8, %c0_9, %c0_10], %49 {strides = array<i32>} : memref<1x8x32xf32, #tpu.memory_space<vmem>>, vector<1x8x32xf32>,
    return
  }
  func.func @transform_0(%arg0: i32, %arg1: i32, %arg2: i32) -> (i32, i32, i32) {
    %c0_i32 = arith.constant 0 : i32
    return %arg0, %arg2, %arg1 : i32, i32, i32
  }
  func.func @transform_1(%arg0: i32, %arg1: i32, %arg2: i32) -> (i32, i32) {
    %c0_i32 = arith.constant 0 : i32
    %c0_i32_0 = arith.constant 0 : i32
    return %c0_i32, %arg1 : i32, i32
  }
  func.func @transform_2(%arg0: i32, %arg1: i32, %arg2: i32) -> (i32, i32, i32) {
    %c0_i32 = arith.constant 0 : i32
    return %arg0, %arg2, %arg1 : i32, i32, i32
  }
}

</mosaic_0001>

<llo_original>
// kernel: tpu_custom_call.1
$region0: #{tpu_custom_call.1}
  #allocation0 [shape = 'u32[]', space=smem, size = 0x4, offset = 0x4, fixed_abs, tag = 'smem constant byte address 0x4 - core index']
  #allocation1 [shape = 'u32[144,128]{1,0:T(1,128)}', space=vmem, size = 0x12000, scoped, tag = 'internal scratch']
  #allocation2 [shape = 'f32[8,32]{1,0:T(8,128)}', space=vmem, size = 0x1000, scoped, tag = 'scratch operand']
  %s0 = inlined_call_operand.hbm [shape: f32[2,8,32], index: 0, kind: input, shape index: {}]
  %s1 = inlined_call_operand.hbm [shape: f32[5,32], index: 1, kind: input, shape index: {}]
  %s2 = inlined_call_operand.hbm [shape: f32[2,8,32], index: 2, kind: output, shape index: {}]
  %s3 = sld [smem:[#allocation0]]
  $region53: #{tpu_custom_call.1} parent=0
    _
  %s5 = ssub.s32 1, %s3
  %s6 = scalar_select 0, %s5, %s3
  $region1: #{tpu_custom_call.1} parent=0
    #allocation3 [shape = 'u8[8192]{0}', space=vmem, size = 0x2000, scoped, tag = 'input window, operand 0']
    #allocation4 [shape = 's32[2]{0}', space=sflag, size = 0x8, scoped, tag = 'scoped memory for tpu_custom_call.1']
    #allocation5 [shape = 's32[2]{0}', space=sflag, size = 0x8, scoped, tag = 'scoped memory for tpu_custom_call.1']
    #allocation6 [shape = 'u8[4096]{0}', space=vmem, size = 0x1000, scoped, tag = 'input window, operand 1, single buffered']
    #allocation7 [shape = 's32[1]{0}', space=sflag, size = 0x4, scoped, tag = 'scoped memory for tpu_custom_call.1']
    #allocation8 [shape = 'u8[8192]{0}', space=vmem, size = 0x2000, scoped, tag = 'output window, operand 0']
    %7 = vsyncpa [#allocation4], 0
    %s8 = scalar_lea.sflag [#allocation4], 1
    %9 = vsyncpa %s8, 0
    %10 = vsyncpa [#allocation7], 0
    %11 = vsyncpa [#allocation5], 0
    %s12 = scalar_lea.sflag [#allocation5], 1
    %13 = vsyncpa %s12, 0
    loop: start=0, step=1, limit=4
    $region2: #{tpu_custom_call.1} parent=1 // loop_pre_header
      _
    $region3: #{tpu_custom_call.1} parent=1 // loop_header
      %s15 = sphi 0, %s19
      %p16 = scmp.ge.s32.totalorder %s15, 4
      %s22 = sphi 0, %s41
      %s23 = sphi 0, %s37
      %s24 = sphi 0, %s33
      %s25 = sphi 0, %s22
      %s26 = sphi 0, %s23
      %s27 = sphi 0, %s24
      %s28 = sphi 0, %s25
      %s29 = sphi 0, %s26
      %s30 = sphi 0, %s27
      %s48 = sphi 0, %s50
      %s51 = sphi 0, %s48
      %s52 = sphi 0, %s51
      %s68 = sphi 0, %s52
      %s74 = sphi 0, %s76
      %s77 = sphi 0, %s74
      %s78 = sphi 0, %s77
      %s94 = sphi 0, %s78
      %s104 = sphi 0, %s106
      %s107 = sphi 0, %s104
      %s108 = sphi 0, %s107
      %s124 = sphi 0, %s108
    $region4: #{tpu_custom_call.1} parent=1 // loop_header_branch
      %18 = sbr.rel (%p16) target = $region8
    $region5: #{tpu_custom_call.1} parent=1 // loop_body
      %s20 = ssub.s32 %s15, 1
      %s21 = ssub.s32 %s15, 2
      %s31 = sadd.s32 1, %s24
      %p32 = scmp.ge.s32.totalorder %s31, 1
      %s33 = scalar_select %p32, 0, %s31
      %s34 = sadd.s32 1, %s23
      %s35 = scalar_select %p32, %s34, %s23
      %p36 = scmp.ge.s32.totalorder %s35, 1
      %s37 = scalar_select %p36, 0, %s35
      %s38 = sadd.s32 1, %s22
      %s39 = scalar_select %p36, %s38, %s22
      %p40 = scmp.ge.s32.totalorder %s39, 2
      %s41 = scalar_select %p40, 0, %s39
      %s42 = ssub.s32 %s22, %s41
      %s43 = ssub.s32 %s24, %s33
      %s44 = sor.u32 %s42, %s43
      %s45 = ssub.s32 %s23, %s37
      %s46 = sor.u32 %s44, %s45
      %p47 = scmp.eq.s32.totalorder %s46, 0
      %s49 = sadd.s32 %s48, 1
      %s50 = scalar_select %p47, %s48, %s49
      %p53 = pneg %p47
      %p54 = scmp.eq.s32.totalorder %s15, 1
      %p55 = por %p53, %p54
      %p56 = scmp.ne.s32.totalorder %s48, %s51
      %p57 = scmp.eq.s32.totalorder %s15, 0
      %p58 = por %p56, %p57
      %p59 = scmp.ne.s32.totalorder %s48, %s51
      %p60 = scmp.eq.s32.totalorder %s20, 1
      %p61 = por %p59, %p60
      %p62 = scmp.ne.s32.totalorder %s51, %s52
      %p63 = scmp.eq.s32.totalorder %s20, 0
      %p64 = por %p62, %p63
      %p65 = scmp.ne.s32.totalorder %s51, %s52
      %p66 = scmp.eq.s32.totalorder %s21, 1
      %p67 = por %p65, %p66
      %p69 = scmp.ne.s32.totalorder %s52, %s68
      %p70 = scmp.eq.s32.totalorder %s21, 0
      %p71 = por %p69, %p70
      %s72 = ssub.s32 %s23, %s37
      %p73 = scmp.eq.s32.totalorder %s72, 0
      %s75 = sadd.s32 %s74, 1
      %s76 = scalar_select %p73, %s74, %s75
      %p79 = pneg %p73
      %p80 = scmp.eq.s32.totalorder %s15, 1
      %p81 = por %p79, %p80
      %p82 = scmp.ne.s32.totalorder %s74, %s77
      %p83 = scmp.eq.s32.totalorder %s15, 0
      %p84 = por %p82, %p83
      %p85 = scmp.ne.s32.totalorder %s74, %s77
      %p86 = scmp.eq.s32.totalorder %s20, 1
      %p87 = por %p85, %p86
      %p88 = scmp.ne.s32.totalorder %s77, %s78
      %p89 = scmp.eq.s32.totalorder %s20, 0
      %p90 = por %p88, %p89
      %p91 = scmp.ne.s32.totalorder %s77, %s78
      %p92 = scmp.eq.s32.totalorder %s21, 1
      %p93 = por %p91, %p92
      %p95 = scmp.ne.s32.totalorder %s78, %s94
      %p96 = scmp.eq.s32.totalorder %s21, 0
      %p97 = por %p95, %p96
      %s98 = ssub.s32 %s22, %s41
      %s99 = ssub.s32 %s24, %s33
      %s100 = sor.u32 %s98, %s99
      %s101 = ssub.s32 %s23, %s37
      %s102 = sor.u32 %s100, %s101
      %p103 = scmp.eq.s32.totalorder %s102, 0
      %s105 = sadd.s32 %s104, 1
      %s106 = scalar_select %p103, %s104, %s105
      %p109 = pneg %p103
      %p110 = scmp.eq.s32.totalorder %s15, 1
      %p111 = por %p109, %p110
      %p112 = scmp.ne.s32.totalorder %s104, %s107
      %p113 = scmp.eq.s32.totalorder %s15, 0
      %p114 = por %p112, %p113
      %p115 = scmp.ne.s32.totalorder %s104, %s107
      %p116 = scmp.eq.s32.totalorder %s20, 1
      %p117 = por %p115, %p116
      %p118 = scmp.ne.s32.totalorder %s107, %s108
      %p119 = scmp.eq.s32.totalorder %s20, 0
      %p120 = por %p118, %p119
      %p121 = scmp.ne.s32.totalorder %s107, %s108
      %p122 = scmp.eq.s32.totalorder %s21, 1
      %p123 = por %p121, %p122
      %p125 = scmp.ne.s32.totalorder %s108, %s124
      %p126 = scmp.eq.s32.totalorder %s21, 0
      %p127 = por %p125, %p126
      %p128 = scmp.le.s32.totalorder 1, %s15
      %p129 = scmp.lt.s32.totalorder %s15, 3
      %p130 = pnand %p128, %p129
      %p131 = pneg %p130
      // Predicated region
      $region9: #{tpu_custom_call.1} parent=5 // pred_check
        _
      $region10: #{tpu_custom_call.1} parent=5 // pred_check_branch
        %133 = sbr.rel (%p130) target = $region12
      $region11: #{tpu_custom_call.1} parent=5 // pred_region
        %s134 = ssub.s32 %s15, 1
        // Predicated region
        $region13: #{tpu_custom_call.1} parent=11 // pred_check
          %p135 = pneg %p90
        $region14: #{tpu_custom_call.1} parent=11 // pred_check_branch
          %137 = sbr.rel (%p135) target = $region16
        $region15: #{tpu_custom_call.1} parent=11 // pred_region
          %s139 = ssub.s32 128, 128
          %140 = vsyncadd [#allocation7], %s139
          %s141 = smul.addr %s26, 128
          %s142 = scalar_lea.hbm %s1, %s141
          %s144 = sshll.u32 [#allocation6], 4
          %s145 = int_to_ptr.vmem [resolvable:$true] %s144
          %147 = dma.hbm_to_vmem [thread:$0]  %s142, 128, %s145, [#allocation7]
        $region16: #{tpu_custom_call.1} parent=11 // pred_fallthru
          _
      $region12: #{tpu_custom_call.1} parent=5 // pred_fallthru
        _
      %p148 = scmp.lt.s32.totalorder %s15, 2
      // Predicated region
      $region17: #{tpu_custom_call.1} parent=5 // pred_check
        %p149 = pneg %p148
      $region18: #{tpu_custom_call.1} parent=5 // pred_check_branch
        %151 = sbr.rel (%p149) target = $region20
      $region19: #{tpu_custom_call.1} parent=5 // pred_region
        // Predicated region
        $region21: #{tpu_custom_call.1} parent=19 // pred_check
          %p152 = pneg %p58
        $region22: #{tpu_custom_call.1} parent=19 // pred_check_branch
          %154 = sbr.rel (%p152) target = $region24
        $region23: #{tpu_custom_call.1} parent=19 // pred_region
          %s155 = sand.u32 %s48, 1
          %s156 = scalar_lea.sflag [#allocation4], %s155
          %s157 = sand.u32 %s48, 1
          %s158 = smul.addr %s157, 8
          %s159 = scalar_lea.vmem [#allocation3], %s158
          %s161 = ssub.s32 128, 128
          %162 = vsyncadd %s156, %s161
          %s163 = sadd.s32 %s23, %s24
          %s164 = sadd.s32 %s163, %s22
          %s165 = smul.addr %s164, 128
          %s166 = scalar_lea.hbm %s0, %s165
          %s168 = sshll.u32 %s159, 4
          %s169 = int_to_ptr.vmem [resolvable:$true] %s168
          %171 = dma.hbm_to_vmem [thread:$0]  %s166, 128, %s169, %s156
        $region24: #{tpu_custom_call.1} parent=19 // pred_fallthru
          _
      $region20: #{tpu_custom_call.1} parent=5 // pred_fallthru
        _
      %p172 = scmp.le.s32.totalorder 1, %s15
      %p173 = scmp.lt.s32.totalorder %s15, 3
      %p174 = pnand %p172, %p173
      %p175 = pneg %p174
      // Predicated region
      $region25: #{tpu_custom_call.1} parent=5 // pred_check
        _
      $region26: #{tpu_custom_call.1} parent=5 // pred_check_branch
        %177 = sbr.rel (%p174) target = $region28
      $region27: #{tpu_custom_call.1} parent=5 // pred_region
        %s178 = ssub.s32 %s15, 1
        %s179 = sand.u32 %s51, 1
        %s180 = scalar_lea.sflag [#allocation4], %s179
        %s181 = sand.u32 %s51, 1
        %s182 = smul.addr %s181, 8
        %s183 = scalar_lea.vmem [#allocation3], %s182
        // Predicated region
        $region29: #{tpu_custom_call.1} parent=27 // pred_check
          %p184 = pneg %p64
        $region30: #{tpu_custom_call.1} parent=27 // pred_check_branch
          %186 = sbr.rel (%p184) target = $region32
        $region31: #{tpu_custom_call.1} parent=27 // pred_region
          %187 = dma.done %s180, 128
        $region32: #{tpu_custom_call.1} parent=27 // pred_fallthru
          _
        // Predicated region
        $region33: #{tpu_custom_call.1} parent=27 // pred_check
          %p188 = pneg %p90
        $region34: #{tpu_custom_call.1} parent=27 // pred_check_branch
          %190 = sbr.rel (%p188) target = $region36
        $region35: #{tpu_custom_call.1} parent=27 // pred_region
          %191 = dma.done [#allocation7], 128
        $region36: #{tpu_custom_call.1} parent=27 // pred_fallthru
          _
        %s192 = sand.u32 %s51, 1
        %s193 = scalar_lea.sflag [#allocation4], %s192
        %s194 = sand.u32 %s51, 1
        %s195 = smul.addr %s194, 8
        %s196 = scalar_lea.vmem [#allocation3], %s195
        %p197 = pneg %p64
        %p198 = pneg %p61
        %p199 = pneg %p90
        %p200 = pneg %p87
        %p201 = pneg %p120
        %p202 = pneg %p117
        %s203 = sand.u32 %s107, 1
        %s204 = scalar_lea.sflag [#allocation5], %s203
        %s205 = sand.u32 %s107, 1
        %s206 = smul.addr %s205, 8
        %s207 = scalar_lea.vmem [#allocation8], %s206
        %v208 = vld [vmem:[%s183] sm:$0xff]
        %p209 = scmp.eq.s32.totalorder %s27, 0
        // Predicated region
        $region37: #{tpu_custom_call.1} parent=27 // pred_check
          %p210 = pneg %p209
        $region38: #{tpu_custom_call.1} parent=27 // pred_check_branch
          %212 = sbr.rel (%p210) target = $region40
        $region39: #{tpu_custom_call.1} parent=27 // pred_region
          %vm213 = vcmask 261120
          %214 = vst.msk [vmem:[#allocation2] sm:$0xff] %vm213, 0.0
        $region40: #{tpu_custom_call.1} parent=27 // pred_fallthru
          _
        %v215 = vld [vmem:[#allocation6] sm:$0x1f]
        %v216 = vlaneseq
        %v217 = vshrl.u32 %v216, 7
        %v218 = vsub.s32 3, %v217
        %v219 = vrot.slane %v215, %v218
        %v220 = vmul.f32 %v208, %v219
        %v221 = vlaneseq
        %v222 = vshrl.u32 %v221, 7
        %v223 = vsub.s32 4, %v222
        %v224 = vrot.slane %v215, %v223
        %v225 = vadd.f32 %v220, %v224
        %v226 = vld [vmem:[#allocation2] sm:$0xff]
        %vm227 = vcmask 261125
        %228 = vst.msk [vmem:[#allocation2] sm:$0xe0] %vm227, %v208
        %v229 = vlaneseq
        %v230 = vshrl.u32 %v229, 7
        %v231 = vsub.s32 0, %v230
        %v232 = vrot.slane %v215, %v231
        %v233 = vmul.f32 %v226, %v232
        %v234 = vmul.f32 %v208, %v232
        %vm237 = vcmask 1042432
        %v238 = vrot.slane %v233, 5
        %v239 = vrot.slane %v234, 5
        %v240 = vsel %vm237, %v238, %v239
        %v242 = vadd.f32 %v225, %v240
        %v243 = vlaneseq
        %v244 = vshrl.u32 %v243, 7
        %v245 = vsub.s32 1, %v244
        %v246 = vrot.slane %v215, %v245
        %v247 = vmul.f32 %v226, %v246
        %v248 = vmul.f32 %v208, %v246
        %vm251 = vcmask 1041408
        %v252 = vrot.slane %v247, 6
        %v253 = vrot.slane %v248, 6
        %v254 = vsel %vm251, %v252, %v253
        %v256 = vadd.f32 %v242, %v254
        %v257 = vlaneseq
        %v258 = vshrl.u32 %v257, 7
        %v259 = vsub.s32 2, %v258
        %v260 = vrot.slane %v215, %v259
        %v261 = vmul.f32 %v226, %v260
        %v262 = vmul.f32 %v208, %v260
        %vm265 = vcmask 1040384
        %v266 = vrot.slane %v261, 7
        %v267 = vrot.slane %v262, 7
        %v268 = vsel %vm265, %v266, %v267
        %v270 = vadd.f32 %v256, %v268
        %v271 = vxor.u32 %v270, 2147483648
        %v272 = vmul.f32 %v271, 1.442695
        %v273 = vpow.pop %v272
        %v274 = vadd.f32 %v273, 1.0
        %v275 = vrcp.pop %v274
        %v276 = vmul.f32 1.0, %v275
        %v277 = vmul.f32 %v270, %v276
        %vm278 = vcmask 261120
        %279 = vst.msk [vmem:[%s207] sm:$0xff] %vm278, %v277
        %s280 = sand.u32 %s107, 1
        %s281 = scalar_lea.sflag [#allocation5], %s280
        %s282 = sand.u32 %s107, 1
        %s283 = smul.addr %s282, 8
        %s284 = scalar_lea.vmem [#allocation8], %s283
        // Predicated region
        $region41: #{tpu_custom_call.1} parent=27 // pred_check
          %p285 = pneg %p117
        $region42: #{tpu_custom_call.1} parent=27 // pred_check_branch
          %287 = sbr.rel (%p285) target = $region44
        $region43: #{tpu_custom_call.1} parent=27 // pred_region
          %s289 = ssub.s32 128, 128
          %290 = vsyncadd %s281, %s289
          %s291 = sadd.s32 %s26, %s27
          %s292 = sadd.s32 %s291, %s25
          %s293 = smul.addr %s292, 128
          %s294 = scalar_lea.hbm %s2, %s293
          %s296 = sshll.u32 %s284, 4
          %s297 = int_to_ptr.vmem [resolvable:$true] %s296
          %299 = dma.vmem_to_hbm [thread:$0]  %s297, 128, %s294, %s281
        $region44: #{tpu_custom_call.1} parent=27 // pred_fallthru
          _
      $region28: #{tpu_custom_call.1} parent=5 // pred_fallthru
        _
      %p300 = scmp.le.s32.totalorder 2, %s15
      // Predicated region
      $region45: #{tpu_custom_call.1} parent=5 // pred_check
        %p301 = pneg %p300
      $region46: #{tpu_custom_call.1} parent=5 // pred_check_branch
        %303 = sbr.rel (%p301) target = $region48
      $region47: #{tpu_custom_call.1} parent=5 // pred_region
        %s304 = ssub.s32 %s15, 2
        // Predicated region
        $region49: #{tpu_custom_call.1} parent=47 // pred_check
          %p305 = pneg %p123
        $region50: #{tpu_custom_call.1} parent=47 // pred_check_branch
          %307 = sbr.rel (%p305) target = $region52
        $region51: #{tpu_custom_call.1} parent=47 // pred_region
          %s308 = sand.u32 %s108, 1
          %s309 = scalar_lea.sflag [#allocation5], %s308
          %s310 = sand.u32 %s108, 1
          %s311 = smul.addr %s310, 8
          %s312 = scalar_lea.vmem [#allocation8], %s311
          %313 = dma.done %s309, 128
        $region52: #{tpu_custom_call.1} parent=47 // pred_fallthru
          _
      $region48: #{tpu_custom_call.1} parent=5 // pred_fallthru
        _
    $region6: #{tpu_custom_call.1} parent=1 // loop_footer
      %s19 = sadd.s32 1, %s15
    $region7: #{tpu_custom_call.1} parent=1 // loop_footer_branch
      %14 = sbr.rel target = $region3
    $region8: #{tpu_custom_call.1} parent=1 // loop_exit
      _
    %314 = vsyncpa [#allocation4], 1
    %s315 = scalar_lea.sflag [#allocation4], 1
    %316 = vsyncpa %s315, 1
    %317 = vsyncpa [#allocation7], 1
    %318 = vsyncpa [#allocation5], 1
    %s319 = scalar_lea.sflag [#allocation5], 1
    %320 = vsyncpa %s319, 1

</llo_original>
